<compile_context>
chip_gen: v6e
topology: v6e:2x2x1
jax: 0.10.0
libtpu: 0.0.40
codegen_flags: <defaults>
</compile_context>

<pallas_src>
import functools

import jax
import jax.numpy as jnp
from jax.experimental import pallas as pl
from jax.experimental.pallas import tpu as pltpu


def _cdiv(a, b):
    return (a + b - 1) // b


def _round_up(a, m):
    return _cdiv(a, m) * m


def _spatial_gate_kernel(x_ref, w_ref, b_ref, o_ref, acc_ref, *, C, Cb, c_masked):
    # x_ref: (Bn, Cb, T) activations (native dtype), one batch/channel/spatial tile
    # w_ref: (Cb, 1)     f32 conv-weight chunk
    # b_ref: (1,)        f32 conv bias (SMEM scalar)
    # o_ref: (Bn, T)     sigmoid gate output (native dtype), resident across the C axis
    # acc_ref: (Bn, T)   f32 accumulator scratch
    c = pl.program_id(2)

    @pl.when(c == 0)
    def _init():
        acc_ref[...] = jnp.zeros_like(acc_ref)

    x = x_ref[...].astype(jnp.float32)          # upcast hidden under the DMA
    w = w_ref[...]                              # (Cb, 1)

    # 1x1 conv == per-pixel channel reduction: VPU broadcast-multiply + reduce.
    p = x * w[None, :, :]                       # (Bn, Cb, T)
    if c_masked:
        # Last channel chunk may read past C (garbage rows): zero them out
        # after the multiply so neither garbage x nor garbage w can leak NaNs.
        cids = c * Cb + jax.lax.broadcasted_iota(jnp.int32, (1, Cb, 1), 1)
        p = jnp.where(cids < C, p, 0.0)
    acc_ref[...] += jnp.sum(p, axis=1)          # (Bn, T)

    @pl.when(c == pl.num_programs(2) - 1)
    def _finalize():
        y = acc_ref[...] + b_ref[0]
        o_ref[...] = (1.0 / (1.0 + jnp.exp(-y))).astype(o_ref.dtype)  # exact sigmoid


def spatial_gate(x_nchw, weight, bias, *,
                 target_block_bytes=12 * 1024 * 1024,
                 vmem_limit_bytes=48 * 1024 * 1024):
    """x_nchw: (N, C, H, W); weight: (1, C, 1, 1); bias: (1,). Returns (N, 1, H, W)."""
    N, C, H, W = x_nchw.shape
    HW = H * W
    x = x_nchw.reshape(N, C, HW)                 # contiguous view, no HBM pass
    itemsize = x.dtype.itemsize
    lane = 128
    sub = max(8, 32 // itemsize)                 # sublane multiple for this dtype

    # Batch tile: dense output sublanes; partial last block handled by Pallas.
    Bn = sub if N >= sub else N

    # --- tile sizing under an explicit VMEM budget ---------------------------
    # Per (channel, spatial) element per pipeline stage:
    #   2 * itemsize bytes (double-buffered native x block)
    # + f32 temporaries inside the kernel (upcast/product).
    temp_bytes = 4 if itemsize >= 4 else 8
    cost = Bn * (2 * itemsize + temp_bytes)
    budget = int(0.75 * vmem_limit_bytes)
    max_ct = max(lane, min(budget // cost, target_block_bytes // (Bn * itemsize)))

    # Keep C whole unless the block would not fit even at T = 128.
    if C * lane <= max_ct:
        Cb = C
    else:
        Cb = max(sub, (max_ct // lane) // sub * sub)   # aligned channel chunk
    gc = _cdiv(C, Cb)

    T = max(lane, (max_ct // Cb) // lane * lane)
    T = min(T, _round_up(HW, lane))

    # Megacore (v7x): make sure the parallel grid has >= 2 (ideally >= 4) steps.
    gn = _cdiv(N, Bn)

    def _shrink_T(t, min_par, t_floor):
        while gn * _cdiv(HW, t) < min_par and t - lane >= t_floor:
            t -= lane
        return t

    T = _shrink_T(T, 4, 1024)
    T = _shrink_T(T, 2, lane)

    grid = (gn, _cdiv(HW, T), gc)

    w = weight.reshape(C, 1).astype(jnp.float32)
    b = bias.reshape(1).astype(jnp.float32)

    kernel = functools.partial(_spatial_gate_kernel, C=C, Cb=Cb,
                               c_masked=(C % Cb) != 0)

    out = pl.pallas_call(
        kernel,
        out_shape=jax.ShapeDtypeStruct((N, HW), x.dtype),     # exact, no padding
        grid_spec=pltpu.PrefetchScalarGridSpec(
            num_scalar_prefetch=0,
            grid=grid,
            in_specs=[
                pl.BlockSpec((Bn, Cb, T), lambda nb, hb, cb: (nb, cb, hb)),
                pl.BlockSpec((Cb, 1), lambda nb, hb, cb: (cb, 0)),
                pl.BlockSpec(memory_space=pltpu.MemorySpace.SMEM),   # bias scalar
            ],
            out_specs=pl.BlockSpec((Bn, T), lambda nb, hb, cb: (nb, hb)),
            scratch_shapes=[pltpu.VMEM((Bn, T), jnp.float32)],
        ),
        compiler_params=pltpu.CompilerParams(
            dimension_semantics=("parallel", "parallel", "arbitrary"),
            vmem_limit_bytes=vmem_limit_bytes,
        ),
    )(x, w, b)

    return out.reshape(N, 1, H, W)


def _reference(x, weight, bias):
    # Pure-VPU f32 reference (avoids MXU precision ambiguity of einsum on TPU).
    y = jnp.sum(x * weight.reshape(1, -1, 1, 1), axis=1, keepdims=True)
    return jax.nn.sigmoid(y + bias.reshape(1, 1, 1, 1))


def _check(N, C, H, W, key, **kwargs):
    kx, kw, kb = jax.random.split(key, 3)
    x = jax.random.normal(kx, (N, C, H, W), dtype=jnp.float32)
    weight = jax.random.normal(kw, (1, C, 1, 1), dtype=jnp.float32) * 0.1
    bias = jax.random.normal(kb, (1,), dtype=jnp.float32) * 0.1

    out = jax.block_until_ready(spatial_gate(x, weight, bias, **kwargs))
    ref = _reference(x, weight, bias)
    assert out.shape == (N, 1, H, W)
    assert jnp.allclose(out, ref, atol=1e-5, rtol=1e-4), \
        f"mismatch for shape {(N, C, H, W)}"


if __name__ == "__main__":
    key = jax.random.PRNGKey(0)
    k1, k2, k3 = jax.random.split(key, 3)

    # Canonical small example consistent with the module's forward.
    _check(2, 4, 16, 16, k1)
    # Partial batch block (N % 8 != 0) and partial spatial block (HW < 128).
    _check(10, 6, 7, 9, k2)
    # Force channel chunking + channel-tail masking via a tiny block target.
    _check(2, 160, 8, 8, k3, target_block_bytes=64 * 1024)

    print("KERNEL_OK")
</pallas_src>

<mosaic_0001>
module attributes {stable_mosaic.version = 11 : i64} {
  func.func @_spatial_gate_kernel(%arg0: i32, %arg1: i32, %arg2: i32, %arg3: memref<2x4x128xf32, #tpu.memory_space<vmem>>, %arg4: memref<4x1xf32, #tpu.memory_space<vmem>>, %arg5: memref<1xf32, #tpu.memory_space<smem>>, %arg6: memref<2x128xf32, #tpu.memory_space<vmem>>, %arg7: memref<2x128xf32, #tpu.memory_space<vmem>>) attributes {dimension_semantics = [#tpu.dimension_semantics<parallel>, #tpu.dimension_semantics<parallel>, #tpu.dimension_semantics<arbitrary>], iteration_bounds = array<i64: 1, 2, 1>, scalar_prefetch = 0 : i64, scratch_operands = 1 : i64, tpu.core_type = #tpu.core_type<tc>, window_params = [{transform_indices = @transform_0, window_bounds = array<i64: 2, 4, 128>}, {transform_indices = @transform_1, window_bounds = array<i64: 4, 1>}, {transform_indices = @transform_2, window_bounds = array<i64: 1>}, {transform_indices = @transform_3, window_bounds = array<i64: 2, 128>}]} {
    %c0_i32 = arith.constant 0 : i32
    %0 = arith.cmpi eq, %arg2, %c0_i32 : i32
    %1 = arith.extui %0 : i1 to i32
    %c0_i32_0 = arith.constant 0 : i32
    %2 = arith.cmpi ne, %1, %c0_i32_0 : i32
    scf.if %2 {
      %cst_11 = arith.constant 0.000000e+00 : f32
      %15 = vector.broadcast %cst_11 : f32 to vector<2x128xf32>
      %c0_12 = arith.constant 0 : index
      %c0_13 = arith.constant 0 : index
      %16 = vector.load %arg7[%c0_12, %c0_13] : memref<2x128xf32, #tpu.memory_space<vmem>>, vector<2x128xf32>
      tpu.vector_store %arg7[%c0_12, %c0_13], %15 {strides = array<i32>} : memref<2x128xf32, #tpu.memory_space<vmem>>, vector<2x128xf32>,
    } else {
    }
    %c0 = arith.constant 0 : index
    %c0_1 = arith.constant 0 : index
    %c0_2 = arith.constant 0 : index
    %3 = vector.load %arg3[%c0, %c0_1, %c0_2] : memref<2x4x128xf32, #tpu.memory_space<vmem>>, vector<2x4x128xf32>
    %c0_3 = arith.constant 0 : index
    %c0_4 = arith.constant 0 : index
    %4 = vector.load %arg4[%c0_3, %c0_4] : memref<4x1xf32, #tpu.memory_space<vmem>>, vector<4x1xf32>
    %5 = vector.shape_cast %4 : vector<4x1xf32> to vector<1x4x1xf32>
    %6 = vector.broadcast %5 : vector<1x4x1xf32> to vector<2x4x128xf32>
    %7 = arith.mulf %3, %6 : vector<2x4x128xf32>
    %c0_5 = arith.constant 0 : index
    %c0_6 = arith.constant 0 : index
    %8 = vector.load %arg7[%c0_5, %c0_6] : memref<2x128xf32, #tpu.memory_space<vmem>>, vector<2x128xf32>
    %cst = arith.constant dense<0.000000e+00> : vector<2x128xf32>
    %9 = vector.multi_reduction <add>, %7, %cst [1] : vector<2x4x128xf32> to vector<2x128xf32>
    %10 = arith.addf %8, %9 : vector<2x128xf32>
    %c0_7 = arith.constant 0 : index
    %c0_8 = arith.constant 0 : index
    %11 = vector.load %arg7[%c0_7, %c0_8] : memref<2x128xf32, #tpu.memory_space<vmem>>, vector<2x128xf32>
    tpu.vector_store %arg7[%c0_7, %c0_8], %10 {strides = array<i32>} : memref<2x128xf32, #tpu.memory_space<vmem>>, vector<2x128xf32>,
    %c0_i32_9 = arith.constant 0 : i32
    %12 = arith.cmpi eq, %arg2, %c0_i32_9 : i32
    %13 = arith.extui %12 : i1 to i32
    %c0_i32_10 = arith.constant 0 : i32
    %14 = arith.cmpi ne, %13, %c0_i32_10 : i32
    scf.if %14 {
      %c0_11 = arith.constant 0 : index
      %c0_12 = arith.constant 0 : index
      %15 = vector.load %arg7[%c0_11, %c0_12] : memref<2x128xf32, #tpu.memory_space<vmem>>, vector<2x128xf32>
      %c0_13 = arith.constant 0 : index
      %16 = memref.load %arg5[%c0_13] : memref<1xf32, #tpu.memory_space<smem>>
      %17 = vector.broadcast %16 : f32 to vector<2x128xf32>
      %18 = arith.addf %15, %17 : vector<2x128xf32>
      %cst_14 = arith.constant 0.000000e+00 : f32
      %19 = vector.broadcast %cst_14 : f32 to vector<2x128xf32>
      %20 = arith.subf %19, %18 : vector<2x128xf32>
      %21 = math.exp %20 : vector<2x128xf32>
      %cst_15 = arith.constant 1.000000e+00 : f32
      %22 = vector.broadcast %cst_15 : f32 to vector<2x128xf32>
      %23 = arith.addf %22, %21 : vector<2x128xf32>
      %cst_16 = arith.constant 1.000000e+00 : f32
      %24 = vector.broadcast %cst_16 : f32 to vector<2x128xf32>
      %25 = arith.divf %24, %23 : vector<2x128xf32>
      %c0_17 = arith.constant 0 : index
      %c0_18 = arith.constant 0 : index
      %26 = vector.load %arg6[%c0_17, %c0_18] : memref<2x128xf32, #tpu.memory_space<vmem>>, vector<2x128xf32>
      tpu.vector_store %arg6[%c0_17, %c0_18], %25 {strides = array<i32>} : memref<2x128xf32, #tpu.memory_space<vmem>>, vector<2x128xf32>,
    } else {
    }
    return
  }
  func.func @transform_0(%arg0: i32, %arg1: i32, %arg2: i32) -> (i32, i32, i32) {
    %c0_i32 = arith.constant 0 : i32
    return %arg0, %arg2, %arg1 : i32, i32, i32
  }
  func.func @transform_1(%arg0: i32, %arg1: i32, %arg2: i32) -> (i32, i32) {
    %c0_i32 = arith.constant 0 : i32
    %c0_i32_0 = arith.constant 0 : i32
    return %arg2, %c0_i32 : i32, i32
  }
  func.func @transform_2(%arg0: i32, %arg1: i32, %arg2: i32) -> i32 {
    %c0_i32 = arith.constant 0 : i32
    %c0_i32_0 = arith.constant 0 : i32
    return %c0_i32 : i32
  }
  func.func @transform_3(%arg0: i32, %arg1: i32, %arg2: i32) -> (i32, i32) {
    %c0_i32 = arith.constant 0 : i32
    return %arg0, %arg1 : i32, i32
  }
}

</mosaic_0001>

<llo_original>
// kernel: tpu_custom_call.1
$region0: #{tpu_custom_call.1}
  #allocation0 [shape = 'u32[]', space=smem, size = 0x4, offset = 0x4, fixed_abs, tag = 'smem constant byte address 0x4 - core index']
  #allocation1 [shape = 'u32[144,128]{1,0:T(1,128)}', space=vmem, size = 0x12000, scoped, tag = 'internal scratch']
  #allocation2 [shape = 'f32[2,128]{1,0:T(2,128)}', space=vmem, size = 0x400, scoped, tag = 'scratch operand']
  #allocation3 [shape = 'f32[1]{0:T(128)S(6)}', space=smem, size = 0x200, scoped, tag = 'scoped memory for tpu_custom_call.1']
  %s0 = inlined_call_operand.hbm [shape: f32[2,4,256], index: 0, kind: input, shape index: {}]
  %s1 = inlined_call_operand.vmem [shape: f32[4,1], index: 1, kind: input, shape index: {}]
  %s2 = inlined_call_operand.<no memory space> [shape: f32[1], index: 2, kind: input, shape index: {}]
  %s3 = inlined_call_operand.hbm [shape: f32[2,256], index: 3, kind: output, shape index: {}]
  %s4 = sld [smem:[#allocation0]]
  $region57: #{tpu_custom_call.1} parent=0
    _
  %s6 = ssub.s32 1, %s4
  %s7 = scalar_select 0, %s6, %s4
  %8 = sst [smem:[#allocation3]] %s2
  $region1: #{tpu_custom_call.1} parent=0
    #allocation4 [shape = 'u8[8192]{0}', space=vmem, size = 0x2000, scoped, tag = 'input window, operand 0']
    #allocation5 [shape = 's32[2]{0}', space=sflag, size = 0x8, scoped, tag = 'scoped memory for tpu_custom_call.1']
    #allocation6 [shape = 's32[2]{0}', space=sflag, size = 0x8, scoped, tag = 'scoped memory for tpu_custom_call.1']
    #allocation7 [shape = 'u8[2048]{0}', space=vmem, size = 0x800, scoped, tag = 'output window, operand 0']
    %9 = vsyncpa [#allocation5], 0
    %s10 = scalar_lea.sflag [#allocation5], 1
    %11 = vsyncpa %s10, 0
    %12 = vsyncpa [#allocation6], 0
    %s13 = scalar_lea.sflag [#allocation6], 1
    %14 = vsyncpa %s13, 0
    loop: start=0, step=1, limit=4
    $region2: #{tpu_custom_call.1} parent=1 // loop_pre_header
      _
    $region3: #{tpu_custom_call.1} parent=1 // loop_header
      %s16 = sphi 0, %s20
      %p17 = scmp.ge.s32.totalorder %s16, 4
      %s23 = sphi 0, %s42
      %s24 = sphi 0, %s38
      %s25 = sphi 0, %s34
      %s26 = sphi 0, %s23
      %s27 = sphi 0, %s24
      %s28 = sphi 0, %s25
      %s29 = sphi 0, %s26
      %s30 = sphi 0, %s27
      %s31 = sphi 0, %s28
      %s49 = sphi 0, %s51
      %s52 = sphi 0, %s49
      %s53 = sphi 0, %s52
      %s69 = sphi 0, %s53
      %s75 = sphi 0, %s77
      %s78 = sphi 0, %s75
      %s79 = sphi 0, %s78
      %s95 = sphi 0, %s79
      %s99 = sphi 0, %s99
      %s101 = sphi 0, %s99
      %s102 = sphi 0, %s101
      %s116 = sphi 0, %s102
      %s124 = sphi 0, %s126
      %s127 = sphi 0, %s124
      %s128 = sphi 0, %s127
      %s144 = sphi 0, %s128
    $region4: #{tpu_custom_call.1} parent=1 // loop_header_branch
      %19 = sbr.rel (%p17) target = $region8
    $region5: #{tpu_custom_call.1} parent=1 // loop_body
      %s21 = ssub.s32 %s16, 1
      %s22 = ssub.s32 %s16, 2
      %s32 = sadd.s32 1, %s25
      %p33 = scmp.ge.s32.totalorder %s32, 1
      %s34 = scalar_select %p33, 0, %s32
      %s35 = sadd.s32 1, %s24
      %s36 = scalar_select %p33, %s35, %s24
      %p37 = scmp.ge.s32.totalorder %s36, 2
      %s38 = scalar_select %p37, 0, %s36
      %s39 = sadd.s32 1, %s23
      %s40 = scalar_select %p37, %s39, %s23
      %p41 = scmp.ge.s32.totalorder %s40, 1
      %s42 = scalar_select %p41, 0, %s40
      %s43 = ssub.s32 %s23, %s42
      %s44 = ssub.s32 %s25, %s34
      %s45 = sor.u32 %s43, %s44
      %s46 = ssub.s32 %s24, %s38
      %s47 = sor.u32 %s45, %s46
      %p48 = scmp.eq.s32.totalorder %s47, 0
      %s50 = sadd.s32 %s49, 1
      %s51 = scalar_select %p48, %s49, %s50
      %p54 = pneg %p48
      %p55 = scmp.eq.s32.totalorder %s16, 1
      %p56 = por %p54, %p55
      %p57 = scmp.ne.s32.totalorder %s49, %s52
      %p58 = scmp.eq.s32.totalorder %s16, 0
      %p59 = por %p57, %p58
      %p60 = scmp.ne.s32.totalorder %s49, %s52
      %p61 = scmp.eq.s32.totalorder %s21, 1
      %p62 = por %p60, %p61
      %p63 = scmp.ne.s32.totalorder %s52, %s53
      %p64 = scmp.eq.s32.totalorder %s21, 0
      %p65 = por %p63, %p64
      %p66 = scmp.ne.s32.totalorder %s52, %s53
      %p67 = scmp.eq.s32.totalorder %s22, 1
      %p68 = por %p66, %p67
      %p70 = scmp.ne.s32.totalorder %s53, %s69
      %p71 = scmp.eq.s32.totalorder %s22, 0
      %p72 = por %p70, %p71
      %s73 = ssub.s32 %s25, %s34
      %p74 = scmp.eq.s32.totalorder %s73, 0
      %s76 = sadd.s32 %s75, 1
      %s77 = scalar_select %p74, %s75, %s76
      %p80 = pneg %p74
      %p81 = scmp.eq.s32.totalorder %s16, 1
      %p82 = por %p80, %p81
      %p83 = scmp.ne.s32.totalorder %s75, %s78
      %p84 = scmp.eq.s32.totalorder %s16, 0
      %p85 = por %p83, %p84
      %p86 = scmp.ne.s32.totalorder %s75, %s78
      %p87 = scmp.eq.s32.totalorder %s21, 1
      %p88 = por %p86, %p87
      %p89 = scmp.ne.s32.totalorder %s78, %s79
      %p90 = scmp.eq.s32.totalorder %s21, 0
      %p91 = por %p89, %p90
      %p92 = scmp.ne.s32.totalorder %s78, %s79
      %p93 = scmp.eq.s32.totalorder %s22, 1
      %p94 = por %p92, %p93
      %p96 = scmp.ne.s32.totalorder %s79, %s95
      %p97 = scmp.eq.s32.totalorder %s22, 0
      %p98 = por %p96, %p97
      %s100 = sadd.s32 %s99, 1
      %p103 = scmp.eq.s32.totalorder %s16, 1
      %p104 = scmp.ne.s32.totalorder %s99, %s101
      %p105 = scmp.eq.s32.totalorder %s16, 0
      %p106 = por %p104, %p105
      %p107 = scmp.ne.s32.totalorder %s99, %s101
      %p108 = scmp.eq.s32.totalorder %s21, 1
      %p109 = por %p107, %p108
      %p110 = scmp.ne.s32.totalorder %s101, %s102
      %p111 = scmp.eq.s32.totalorder %s21, 0
      %p112 = por %p110, %p111
      %p113 = scmp.ne.s32.totalorder %s101, %s102
      %p114 = scmp.eq.s32.totalorder %s22, 1
      %p115 = por %p113, %p114
      %p117 = scmp.ne.s32.totalorder %s102, %s116
      %p118 = scmp.eq.s32.totalorder %s22, 0
      %p119 = por %p117, %p118
      %s120 = ssub.s32 %s23, %s42
      %s121 = ssub.s32 %s24, %s38
      %s122 = sor.u32 %s120, %s121
      %p123 = scmp.eq.s32.totalorder %s122, 0
      %s125 = sadd.s32 %s124, 1
      %s126 = scalar_select %p123, %s124, %s125
      %p129 = pneg %p123
      %p130 = scmp.eq.s32.totalorder %s16, 1
      %p131 = por %p129, %p130
      %p132 = scmp.ne.s32.totalorder %s124, %s127
      %p133 = scmp.eq.s32.totalorder %s16, 0
      %p134 = por %p132, %p133
      %p135 = scmp.ne.s32.totalorder %s124, %s127
      %p136 = scmp.eq.s32.totalorder %s21, 1
      %p137 = por %p135, %p136
      %p138 = scmp.ne.s32.totalorder %s127, %s128
      %p139 = scmp.eq.s32.totalorder %s21, 0
      %p140 = por %p138, %p139
      %p141 = scmp.ne.s32.totalorder %s127, %s128
      %p142 = scmp.eq.s32.totalorder %s22, 1
      %p143 = por %p141, %p142
      %p145 = scmp.ne.s32.totalorder %s128, %s144
      %p146 = scmp.eq.s32.totalorder %s22, 0
      %p147 = por %p145, %p146
      %p148 = scmp.le.s32.totalorder 1, %s16
      %p149 = scmp.lt.s32.totalorder %s16, 3
      %p150 = pnand %p148, %p149
      %p151 = pneg %p150
      // Predicated region
      $region9: #{tpu_custom_call.1} parent=5 // pred_check
        _
      $region10: #{tpu_custom_call.1} parent=5 // pred_check_branch
        %153 = sbr.rel (%p150) target = $region12
      $region11: #{tpu_custom_call.1} parent=5 // pred_region
        %s154 = ssub.s32 %s16, 1
        // Predicated region
        $region13: #{tpu_custom_call.1} parent=11 // pred_check
          %p155 = pneg %p91
        $region14: #{tpu_custom_call.1} parent=11 // pred_check_branch
          %157 = sbr.rel (%p155) target = $region16
        $region15: #{tpu_custom_call.1} parent=11 // pred_region
          %p158 = scmp.lt.s32.totalorder %s28, 0
          %s159 = scalar_select %p158, %s28, 0
          %s160 = smul.addr %s159, 4
          %s161 = scalar_lea.vmem %s1, %s160
        $region16: #{tpu_custom_call.1} parent=11 // pred_fallthru
          _
        // Predicated region
        $region17: #{tpu_custom_call.1} parent=11 // pred_check
          %p162 = pneg %p112
        $region18: #{tpu_custom_call.1} parent=11 // pred_check_branch
          %164 = sbr.rel (%p162) target = $region20
        $region19: #{tpu_custom_call.1} parent=11 // pred_region
          _
        $region20: #{tpu_custom_call.1} parent=11 // pred_fallthru
          _
      $region12: #{tpu_custom_call.1} parent=5 // pred_fallthru
        _
      %p165 = scmp.lt.s32.totalorder %s16, 2
      // Predicated region
      $region21: #{tpu_custom_call.1} parent=5 // pred_check
        %p166 = pneg %p165
      $region22: #{tpu_custom_call.1} parent=5 // pred_check_branch
        %168 = sbr.rel (%p166) target = $region24
      $region23: #{tpu_custom_call.1} parent=5 // pred_region
        // Predicated region
        $region25: #{tpu_custom_call.1} parent=23 // pred_check
          %p169 = pneg %p59
        $region26: #{tpu_custom_call.1} parent=23 // pred_check_branch
          %171 = sbr.rel (%p169) target = $region28
        $region27: #{tpu_custom_call.1} parent=23 // pred_region
          %s172 = sand.u32 %s49, 1
          %s173 = scalar_lea.sflag [#allocation5], %s172
          %s174 = sand.u32 %s49, 1
          %s175 = smul.addr %s174, 8
          %s176 = scalar_lea.vmem [#allocation4], %s175
          %s177 = smul.u32 2, %s23
          %s179 = ssub.s32 128, 128
          %180 = vsyncadd %s173, %s179
          %s181 = smul.addr %s25, 2
          %s182 = sadd.s32 %s24, %s181
          %s183 = smul.addr %s177, 2
          %s184 = sadd.s32 %s182, %s183
          %s185 = smul.addr %s184, 64
          %s186 = scalar_lea.hbm %s0, %s185
          %s187 = sshll.u32 %s176, 4
          %s188 = int_to_ptr.vmem [resolvable:$true] %s187
          %193 = dma.hbm_to_vmem [thread:$0]  %s186, 128, %s188, %s173, 128, 64, 4
        $region28: #{tpu_custom_call.1} parent=23 // pred_fallthru
          _
      $region24: #{tpu_custom_call.1} parent=5 // pred_fallthru
        _
      %p194 = scmp.le.s32.totalorder 1, %s16
      %p195 = scmp.lt.s32.totalorder %s16, 3
      %p196 = pnand %p194, %p195
      %p197 = pneg %p196
      // Predicated region
      $region29: #{tpu_custom_call.1} parent=5 // pred_check
        _
      $region30: #{tpu_custom_call.1} parent=5 // pred_check_branch
        %199 = sbr.rel (%p196) target = $region32
      $region31: #{tpu_custom_call.1} parent=5 // pred_region
        %s200 = ssub.s32 %s16, 1
        %s201 = sand.u32 %s52, 1
        %s202 = scalar_lea.sflag [#allocation5], %s201
        %s203 = sand.u32 %s52, 1
        %s204 = smul.addr %s203, 8
        %s205 = scalar_lea.vmem [#allocation4], %s204
        // Predicated region
        $region33: #{tpu_custom_call.1} parent=31 // pred_check
          %p206 = pneg %p65
        $region34: #{tpu_custom_call.1} parent=31 // pred_check_branch
          %208 = sbr.rel (%p206) target = $region36
        $region35: #{tpu_custom_call.1} parent=31 // pred_region
          %209 = dma.done %s202, 128
        $region36: #{tpu_custom_call.1} parent=31 // pred_fallthru
          _
        %s210 = sand.u32 %s52, 1
        %s211 = scalar_lea.sflag [#allocation5], %s210
        %s212 = sand.u32 %s52, 1
        %s213 = smul.addr %s212, 8
        %s214 = scalar_lea.vmem [#allocation4], %s213
        %p215 = pneg %p65
        %p216 = pneg %p62
        %p217 = scmp.lt.s32.totalorder %s28, 0
        %s218 = scalar_select %p217, %s28, 0
        %s219 = smul.addr %s218, 4
        %s220 = scalar_lea.vmem %s1, %s219
        %p221 = pneg %p91
        %p222 = pneg %p88
        %p223 = pneg %p112
        %p224 = pneg %p109
        %p225 = pneg %p140
        %p226 = pneg %p137
        %s227 = sand.u32 %s127, 1
        %s228 = scalar_lea.sflag [#allocation6], %s227
        %s229 = sand.u32 %s127, 1
        %s230 = smul.addr %s229, 2
        %s231 = scalar_lea.vmem [#allocation7], %s230
        %s232 = smul.u32 2, %s26
        %p233 = scmp.lt.s32.totalorder %s28, 0
        %s234 = scalar_select %p233, %s28, 0
        %s235 = smul.addr %s234, 4
        %s236 = scalar_lea.vmem %s1, %s235
        %p237 = scmp.eq.s32.totalorder %s28, 0
        // Predicated region
        $region37: #{tpu_custom_call.1} parent=31 // pred_check
          %p238 = pneg %p237
        $region38: #{tpu_custom_call.1} parent=31 // pred_check_branch
          %240 = sbr.rel (%p238) target = $region40
        $region39: #{tpu_custom_call.1} parent=31 // pred_region
          %241 = vst [vmem:[#allocation2] sm:$0x3] 0.0
        $region40: #{tpu_custom_call.1} parent=31 // pred_fallthru
          _
        %v242 = vld [vmem:[%s205] sm:$0xf]
        %v243 = vld [vmem:[%s205 + $0x4] sm:$0xf]
        %v244 = vld [vmem:[%s236] sm:$0xf]
        %246 = vset.pattern.permute.xlu0 0
        %247 = vperm.xlu0 %246, %v244
        %v248 = vpop.permute.xlu0 %247
        %v250 = vmul.f32 %v242, %v248
        %v251 = vmul.f32 %v243, %v248
        %v252 = vld [vmem:[#allocation2] sm:$0x3]
        %vm253 = vcmask 1043456
        %v254 = vsel %vm253, %v250, 0.0
        %v255 = vrot.slane %v254, 4
        %v256 = vadd.f32 %v254, %v255
        %v257 = vrot.slane %v256, 2
        %v258 = vadd.f32 %v256, %v257
        %v259 = vrot.slane %v258, 1
        %v260 = vadd.f32 %v258, %v259
        %v261 = vsel %vm253, %v251, 0.0
        %v262 = vrot.slane %v261, 4
        %v263 = vadd.f32 %v261, %v262
        %v264 = vrot.slane %v263, 2
        %v265 = vadd.f32 %v263, %v264
        %v266 = vrot.slane %v265, 1
        %v267 = vadd.f32 %v265, %v266
        %vm270 = vcmask 1041409
        %v271 = vsel %vm270, %v267, %v260
        %v273 = vadd.f32 %v252, %v271
        %274 = vst [vmem:[#allocation2] sm:$0x3] %v273
        // Predicated region
        $region41: #{tpu_custom_call.1} parent=31 // pred_check
          %p275 = pneg %p237
        $region42: #{tpu_custom_call.1} parent=31 // pred_check_branch
          %277 = sbr.rel (%p275) target = $region44
        $region43: #{tpu_custom_call.1} parent=31 // pred_region
          %v278 = vld [vmem:[#allocation2] sm:$0x3]
          %s279 = sld [smem:[#allocation3]]
          %v280 = vstv %s279
          %v281 = vadd.f32 %v278, %v280
          %v282 = vsub.f32 0.0, %v281
          %v283 = vmul.f32 %v282, 1.442695
          %v284 = vpow.pop %v283
          %v285 = vadd.f32 %v284, 1.0
          %v286 = vrcp.pop %v285
          %v287 = vmul.f32 1.0, %v286
          %288 = vst [vmem:[%s231] sm:$0x3] %v287
        $region44: #{tpu_custom_call.1} parent=31 // pred_fallthru
          _
        %s289 = sand.u32 %s127, 1
        %s290 = scalar_lea.sflag [#allocation6], %s289
        %s291 = sand.u32 %s127, 1
        %s292 = smul.addr %s291, 2
        %s293 = scalar_lea.vmem [#allocation7], %s292
        // Predicated region
        $region45: #{tpu_custom_call.1} parent=31 // pred_check
          %p294 = pneg %p137
        $region46: #{tpu_custom_call.1} parent=31 // pred_check_branch
          %296 = sbr.rel (%p294) target = $region48
        $region47: #{tpu_custom_call.1} parent=31 // pred_region
          %s298 = ssub.s32 32, 32
          %299 = vsyncadd %s290, %s298
          %s300 = smul.addr %s26, 2
          %s301 = sadd.s32 %s27, %s300
          %s302 = smul.addr %s301, 32
          %s303 = scalar_lea.hbm %s3, %s302
          %s305 = sshll.u32 %s293, 4
          %s306 = int_to_ptr.vmem [resolvable:$true] %s305
          %308 = dma.vmem_to_hbm [thread:$0]  %s306, 32, %s303, %s290
        $region48: #{tpu_custom_call.1} parent=31 // pred_fallthru
          _
      $region32: #{tpu_custom_call.1} parent=5 // pred_fallthru
        _
      %p309 = scmp.le.s32.totalorder 2, %s16
      // Predicated region
      $region49: #{tpu_custom_call.1} parent=5 // pred_check
        %p310 = pneg %p309
      $region50: #{tpu_custom_call.1} parent=5 // pred_check_branch
        %312 = sbr.rel (%p310) target = $region52
      $region51: #{tpu_custom_call.1} parent=5 // pred_region
        %s313 = ssub.s32 %s16, 2
        // Predicated region
        $region53: #{tpu_custom_call.1} parent=51 // pred_check
          %p314 = pneg %p143
        $region54: #{tpu_custom_call.1} parent=51 // pred_check_branch
          %316 = sbr.rel (%p314) target = $region56
        $region55: #{tpu_custom_call.1} parent=51 // pred_region
          %s317 = sand.u32 %s128, 1
          %s318 = scalar_lea.sflag [#allocation6], %s317
          %s319 = sand.u32 %s128, 1
          %s320 = smul.addr %s319, 2
          %s321 = scalar_lea.vmem [#allocation7], %s320
          %322 = dma.done %s318, 32
        $region56: #{tpu_custom_call.1} parent=51 // pred_fallthru
          _
      $region52: #{tpu_custom_call.1} parent=5 // pred_fallthru
        _
    $region6: #{tpu_custom_call.1} parent=1 // loop_footer
      %s20 = sadd.s32 1, %s16
    $region7: #{tpu_custom_call.1} parent=1 // loop_footer_branch
      %15 = sbr.rel target = $region3
    $region8: #{tpu_custom_call.1} parent=1 // loop_exit
      _
    %323 = vsyncpa [#allocation5], 1
    %s324 = scalar_lea.sflag [#allocation5], 1
    %325 = vsyncpa %s324, 1
    %326 = vsyncpa [#allocation6], 1
    %s327 = scalar_lea.sflag [#allocation6], 1
    %328 = vsyncpa %s327, 1

</llo_original>
